<compile_context>
chip_gen: v7x
topology: tpu7x:2x2x1
jax: 0.10.0
libtpu: 0.0.40
codegen_flags: <defaults>
</compile_context>

<pallas_src>
import math

import numpy as np
import jax
import jax.numpy as jnp
from jax import lax
from jax.experimental import pallas as pl
from jax.experimental.pallas import tpu as pltpu


# ----------------------------- parameter setup ------------------------------
def compute_kernel_size(sigma_val: float) -> int:
    return 2 * int(4.0 * sigma_val + 0.5) + 1


def gaussian_1d(window_size: int, sigma: float):
    """Pure-Python normalized Gaussian window (deterministic, no checkpoint)."""
    xs = [float(i - window_size // 2) for i in range(window_size)]
    if window_size % 2 == 0:
        xs = [x + 0.5 for x in xs]
    g = [math.exp(-(x ** 2) / (2.0 * sigma ** 2)) for x in xs]
    s = sum(g)
    return [v / s for v in g]


def _compute_padding(kernel_size):
    computed = [k - 1 for k in kernel_size]
    out_padding = 2 * len(kernel_size) * [0]
    for i in range(len(kernel_size)):
        computed_tmp = computed[-(i + 1)]
        pad_front = computed_tmp // 2
        pad_rear = computed_tmp - pad_front
        out_padding[2 * i + 0] = pad_front
        out_padding[2 * i + 1] = pad_rear
    # [w_front, w_rear, h_front, h_rear]  (torch F.pad ordering)
    return out_padding


def _border_index(p, n, border_type):
    """Map a (possibly out-of-range) source index into [0, n) per border rule."""
    if 0 <= p < n:
        return p
    if border_type == "reflect":
        if p < 0:
            p = -p
        if p > n - 1:
            p = 2 * (n - 1) - p
        return p
    if border_type == "replicate":
        return min(max(p, 0), n - 1)
    if border_type == "circular":
        return p % n
    if border_type in ("constant", "zeros"):
        return None          # tap falls on zero padding -> no contribution
    raise ValueError(f"unsupported border_type: {border_type}")


def _build_h_operator(out_h, in_h, taps, pad_front, border_type, fold_pad):
    """(out_h, in_h) matrix for the row pass  t = Ah @ x  (padding folded in)."""
    a = np.zeros((out_h, in_h), dtype=np.float32)
    for h in range(out_h):
        for i, wt in enumerate(taps):
            p = h + i - (pad_front if fold_pad else 0)
            q = _border_index(p, in_h, border_type) if fold_pad else p
            if q is None:
                continue
            a[h, q] += wt
    return a


def _build_w_operator(out_w, out_w_aligned, in_w, taps, pad_front, border_type,
                      fold_pad):
    """(in_w, out_w_aligned) matrix for the col pass  o = t @ Aw (lane-dense)."""
    a = np.zeros((in_w, out_w_aligned), dtype=np.float32)
    for w in range(out_w):
        for j, wt in enumerate(taps):
            p = w + j - (pad_front if fold_pad else 0)
            q = _border_index(p, in_w, border_type) if fold_pad else p
            if q is None:
                continue
            a[q, w] += wt
    return a


def _vmem_capacity_bytes():
    """Per-generation VMEM capacity (v5e/v6e 128 MiB, v7x 64 MiB)."""
    try:
        return int(pltpu.get_tpu_info().vmem_capacity_bytes)
    except Exception:
        return 64 * 1024 * 1024          # conservative (v7x) fallback


def _pick_channel_block(N, H, W, out_h, out_w, w_al, in_itemsize, out_itemsize,
                        op_itemsize, vmem_cap):
    """(Batch*Channel) rows per grid step, budgeted on the real VMEM footprint."""
    budget = max(4 * 1024 * 1024, min(12 * 1024 * 1024, vmem_cap // 5))
    # Operators: double-buffered by default BlockSpec pipelining.
    op_bytes = 2 * (out_h * H + W * w_al) * op_itemsize
    # Per-channel: in block (x2 dbuf), out block (x2 dbuf), bf16 copy of x,
    # bf16 t scratch, f32 matmul temporaries.
    per_ch = (2 * H * W * in_itemsize
              + 2 * out_h * out_w * out_itemsize
              + H * W * op_itemsize
              + H * w_al * op_itemsize
              + (H * w_al + out_h * w_al) * 4)
    cb = max(1, (budget - op_bytes) // per_ch)
    cb = int(min(cb, N))
    if N >= 2:
        cb = min(cb, -(-N // 2))         # keep >= 2 grid steps (v7x: 2 TCs)
    cb = min(cb, 16)                     # bound channel-loop unroll pressure
    # Prefer an exact divisor of N (avoids a ragged tail block) when it is
    # close enough; otherwise keep cb and let Pallas handle the ragged block.
    best = 1
    for cand in range(1, cb + 1):
        if N % cand == 0:
            best = cand
    if best * 2 >= cb:
        cb = best
    return max(int(cb), 1), op_bytes, per_ch


# ------------------------------ Pallas kernel -------------------------------
def _blur_kernel(x_ref, ah_ref, aw_ref, o_ref, t_ref):
    """One (cb, H, W) block:  o[c] = Ah @ (x[c] @ Aw)   (both passes on MXU).

    Pass 1 (W direction) is fused across channels into one lane-dense matmul;
    pass 2 (H direction) runs per channel on the already lane-aligned result.
    """
    cb, H, W = x_ref.shape
    w_al = aw_ref.shape[1]
    out_w = o_ref.shape[-1]
    cdt = aw_ref.dtype                               # MXU compute dtype

    # ---- pass 1: (cb*H, W) @ (W, w_al), f32 accumulate ----
    xw = x_ref[...].reshape(cb * H, W).astype(cdt)
    t = jnp.dot(xw, aw_ref[...], preferred_element_type=jnp.float32)
    t_ref[...] = t.reshape(cb, H, w_al).astype(cdt)

    # ---- pass 2: per channel (out_h, H) @ (H, w_al) ----
    ah = ah_ref[...]

    def h_pass(c):
        o = jnp.dot(ah, t_ref[c], preferred_element_type=jnp.float32)
        if out_w != w_al:
            o = o[:, :out_w]                          # masked only on last vreg
        o_ref[c] = o.astype(o_ref.dtype)

    if cb <= 4:
        for c in range(cb):                           # small static unroll
            h_pass(c)
    else:
        def body(c, carry):                           # dynamic ref indexing
            h_pass(c)
            return carry
        lax.fori_loop(0, cb, body, 0)


# ------------------------------ module wrapper -------------------------------
class GaussianBlur2d:
    def __init__(self, sigma, channels=1, kernel_size=None, normalize=True,
                 border_type="reflect", padding="same",
                 mxu_dtype=jnp.bfloat16):
        sigma = sigma if isinstance(sigma, tuple) else (sigma, sigma)
        self.channels = channels
        if kernel_size is None:
            kernel_size = (compute_kernel_size(sigma[0]),
                           compute_kernel_size(sigma[1]))
        else:
            kernel_size = kernel_size if isinstance(kernel_size, tuple) \
                else (kernel_size, kernel_size)

        kh = gaussian_1d(kernel_size[0], sigma[0])        # along H
        kw = gaussian_1d(kernel_size[1], sigma[1])        # along W
        k2d = [[a * b for b in kw] for a in kh]
        if normalize:
            norm = sum(abs(v) for row in k2d for v in row)
            kw = [v / norm for v in kw]                   # fold norm into W taps
            k2d = [[v / norm for v in row] for row in k2d]
        self.kernel_h = kh                                # 1D taps (H direction)
        self.kernel_w = kw                                # 1D taps (W direction)
        self.kernel_weights = k2d                         # (KH, KW) for reference
        self.border_type = border_type
        self.padding = padding
        self.height, self.width = kernel_size
        self.padding_shape = _compute_padding([self.height, self.width])
        self.compute_dtype = jnp.dtype(mxu_dtype)
        self._op_cache = {}                               # (H, W) -> operators

    def _operators(self, H, W):
        key = (H, W)
        if key not in self._op_cache:
            same = self.padding == "same"
            pw_f, pw_r, ph_f, ph_r = self.padding_shape
            if same and self.border_type == "reflect":
                assert max(ph_f, ph_r) < H and max(pw_f, pw_r) < W, \
                    "reflect padding requires pad < spatial size"
            out_h = H if same else H - self.height + 1
            out_w = W if same else W - self.width + 1
            w_al = -(-out_w // 128) * 128                 # lane-dense matmul width
            ah = _build_h_operator(out_h, H, self.kernel_h, ph_f,
                                   self.border_type, same)
            aw = _build_w_operator(out_w, w_al, W, self.kernel_w, pw_f,
                                   self.border_type, same)
            self._op_cache[key] = (
                jnp.asarray(ah, dtype=self.compute_dtype),
                jnp.asarray(aw, dtype=self.compute_dtype),
                out_h, out_w, w_al)
        return self._op_cache[key]

    def __call__(self, x):
        assert x.ndim == 4, x.shape
        B, C, H, W = x.shape
        ah, aw, out_h, out_w, w_al = self._operators(H, W)

        N = B * C                                           # fold batch into C
        x3 = x.reshape(N, H, W)

        vmem_cap = _vmem_capacity_bytes()
        itemsize = jnp.dtype(x.dtype).itemsize
        op_itemsize = self.compute_dtype.itemsize
        cb, op_bytes, per_ch = _pick_channel_block(
            N, H, W, out_h, out_w, w_al, itemsize, itemsize, op_itemsize,
            vmem_cap)

        footprint = op_bytes + cb * per_ch
        vmem_limit = max(32 * 1024 * 1024, 2 * footprint + (1 << 22))
        vmem_limit = int(min(vmem_limit, 0.8 * vmem_cap))

        out = pl.pallas_call(
            _blur_kernel,
            out_shape=jax.ShapeDtypeStruct((N, out_h, out_w), x.dtype),
            grid_spec=pltpu.PrefetchScalarGridSpec(
                num_scalar_prefetch=0,
                grid=(pl.cdiv(N, cb),),
                in_specs=[
                    pl.BlockSpec((cb, H, W), lambda i: (i, 0, 0)),
                    pl.BlockSpec((out_h, H), lambda i: (0, 0)),
                    pl.BlockSpec((W, w_al), lambda i: (0, 0)),
                ],
                out_specs=pl.BlockSpec((cb, out_h, out_w),
                                       lambda i: (i, 0, 0)),
                scratch_shapes=[pltpu.VMEM((cb, H, w_al), self.compute_dtype)],
            ),
            compiler_params=pltpu.CompilerParams(
                dimension_semantics=("parallel",),
                vmem_limit_bytes=vmem_limit,
            ),
        )(x3, ah, aw)
        return out.reshape(B, C, out_h, out_w)


# ------------------------------ reference check ------------------------------
_PAD_MODE = {"reflect": "reflect", "replicate": "edge", "circular": "wrap",
             "constant": "constant", "zeros": "constant"}


def _reference_blur(x, weights, padding_shape, border_type):
    pw_f, pw_r, ph_f, ph_r = padding_shape
    xp = jnp.pad(x, ((0, 0), (0, 0), (ph_f, ph_r), (pw_f, pw_r)),
                 mode=_PAD_MODE[border_type])
    C = x.shape[1]
    k = jnp.asarray(weights, dtype=x.dtype)                 # (KH, KW)
    k = jnp.broadcast_to(k[None, None], (C, 1) + k.shape)   # depthwise (C,1,KH,KW)
    return lax.conv_general_dilated(
        xp, k, window_strides=(1, 1), padding="VALID",
        dimension_numbers=("NCHW", "OIHW", "NCHW"),
        feature_group_count=C)


if __name__ == "__main__":
    B, C, H, W = 2, 4, 16, 16
    sigma = 1.0                      # -> kernel_size = 9, reflect pad = 4

    key = jax.random.PRNGKey(0)
    x = jax.random.normal(key, (B, C, H, W), dtype=jnp.float32)

    blur = GaussianBlur2d(sigma=sigma, channels=C)
    y = blur(x)
    y = jax.block_until_ready(y)

    assert y.shape == (B, C, H, W), y.shape

    y_ref = _reference_blur(x, blur.kernel_weights, blur.padding_shape,
                            blur.border_type)
    y_ref = jax.block_until_ready(y_ref)
    # bf16 MXU operands with f32 accumulate -> ~1e-2-level agreement is expected.
    max_err = float(jnp.max(jnp.abs(y - y_ref)))
    assert jnp.allclose(y, y_ref, atol=3e-2, rtol=3e-2), max_err

    print("KERNEL_OK")
</pallas_src>

<mosaic_0001>
module attributes {stable_mosaic.version = 11 : i64} {
  func.func @_blur_kernel(%arg0: i32, %arg1: memref<4x16x16xf32, #tpu.memory_space<vmem>>, %arg2: memref<16x16xbf16, #tpu.memory_space<vmem>>, %arg3: memref<16x128xbf16, #tpu.memory_space<vmem>>, %arg4: memref<4x16x16xf32, #tpu.memory_space<vmem>>, %arg5: memref<4x16x128xbf16, #tpu.memory_space<vmem>>) attributes {dimension_semantics = [#tpu.dimension_semantics<parallel>], iteration_bounds = array<i64: 2>, scalar_prefetch = 0 : i64, scratch_operands = 1 : i64, tpu.core_type = #tpu.core_type<tc>, window_params = [{transform_indices = @transform_0, window_bounds = array<i64: 4, 16, 16>}, {pipeline_mode = #tpu.pipeline_mode<synchronous>, transform_indices = @transform_1, window_bounds = array<i64: 16, 16>}, {pipeline_mode = #tpu.pipeline_mode<synchronous>, transform_indices = @transform_2, window_bounds = array<i64: 16, 128>}, {transform_indices = @transform_3, window_bounds = array<i64: 4, 16, 16>}]} {
    %c0 = arith.constant 0 : index
    %c0_0 = arith.constant 0 : index
    %c0_1 = arith.constant 0 : index
    %0 = vector.load %arg1[%c0, %c0_0, %c0_1] : memref<4x16x16xf32, #tpu.memory_space<vmem>>, vector<4x16x16xf32>
    %1 = vector.shape_cast %0 : vector<4x16x16xf32> to vector<64x16xf32>
    %2 = arith.truncf %1 : vector<64x16xf32> to vector<64x16xbf16>
    %c0_2 = arith.constant 0 : index
    %c0_3 = arith.constant 0 : index
    %3 = vector.load %arg3[%c0_2, %c0_3] : memref<16x128xbf16, #tpu.memory_space<vmem>>, vector<16x128xbf16>
    %cst = arith.constant dense<0.000000e+00> : vector<64x128xf32>
    %4 = tpu.matmul %2, %3, %cst {dimension_numbers = #tpu.dot_dimension_numbers<[1], [0], [0], [1], [0, 0, 1, 1], [], []>} : vector<64x16xbf16>, vector<16x128xbf16>, vector<64x128xf32> -> vector<64x128xf32>
    %5 = vector.shape_cast %4 : vector<64x128xf32> to vector<4x16x128xf32>
    %6 = arith.truncf %5 : vector<4x16x128xf32> to vector<4x16x128xbf16>
    %c0_4 = arith.constant 0 : index
    %c0_5 = arith.constant 0 : index
    %c0_6 = arith.constant 0 : index
    %7 = vector.load %arg5[%c0_4, %c0_5, %c0_6] : memref<4x16x128xbf16, #tpu.memory_space<vmem>>, vector<4x16x128xbf16>
    tpu.vector_store %arg5[%c0_4, %c0_5, %c0_6], %6 {strides = array<i32>} : memref<4x16x128xbf16, #tpu.memory_space<vmem>>, vector<4x16x128xbf16>,
    %c0_7 = arith.constant 0 : index
    %c0_8 = arith.constant 0 : index
    %8 = vector.load %arg2[%c0_7, %c0_8] : memref<16x16xbf16, #tpu.memory_space<vmem>>, vector<16x16xbf16>
    %c0_9 = arith.constant 0 : index
    %c0_10 = arith.constant 0 : index
    %c0_11 = arith.constant 0 : index
    %9 = vector.load %arg5[%c0_9, %c0_10, %c0_11] : memref<4x16x128xbf16, #tpu.memory_space<vmem>>, vector<1x16x128xbf16>
    %10 = vector.shape_cast %9 : vector<1x16x128xbf16> to vector<16x128xbf16>
    %cst_12 = arith.constant dense<0.000000e+00> : vector<16x128xf32>
    %11 = tpu.matmul %8, %10, %cst_12 {dimension_numbers = #tpu.dot_dimension_numbers<[1], [0], [0], [1], [0, 0, 1, 1], [], []>} : vector<16x16xbf16>, vector<16x128xbf16>, vector<16x128xf32> -> vector<16x128xf32>
    %12 = vector.extract_strided_slice %11 {offsets = [0, 0], sizes = [16, 16], strides = [1, 1]} : vector<16x128xf32> to vector<16x16xf32>
    %c0_13 = arith.constant 0 : index
    %c0_14 = arith.constant 0 : index
    %c0_15 = arith.constant 0 : index
    %13 = vector.load %arg4[%c0_13, %c0_14, %c0_15] : memref<4x16x16xf32, #tpu.memory_space<vmem>>, vector<1x16x16xf32>
    %14 = vector.shape_cast %13 : vector<1x16x16xf32> to vector<16x16xf32>
    %15 = vector.shape_cast %12 : vector<16x16xf32> to vector<1x16x16xf32>
    tpu.vector_store %arg4[%c0_13, %c0_14, %c0_15], %15 {strides = array<i32>} : memref<4x16x16xf32, #tpu.memory_space<vmem>>, vector<1x16x16xf32>,
    %c1 = arith.constant 1 : index
    %c0_16 = arith.constant 0 : index
    %c0_17 = arith.constant 0 : index
    %16 = vector.load %arg5[%c1, %c0_16, %c0_17] : memref<4x16x128xbf16, #tpu.memory_space<vmem>>, vector<1x16x128xbf16>
    %17 = vector.shape_cast %16 : vector<1x16x128xbf16> to vector<16x128xbf16>
    %cst_18 = arith.constant dense<0.000000e+00> : vector<16x128xf32>
    %18 = tpu.matmul %8, %17, %cst_18 {dimension_numbers = #tpu.dot_dimension_numbers<[1], [0], [0], [1], [0, 0, 1, 1], [], []>} : vector<16x16xbf16>, vector<16x128xbf16>, vector<16x128xf32> -> vector<16x128xf32>
    %19 = vector.extract_strided_slice %18 {offsets = [0, 0], sizes = [16, 16], strides = [1, 1]} : vector<16x128xf32> to vector<16x16xf32>
    %c1_19 = arith.constant 1 : index
    %c0_20 = arith.constant 0 : index
    %c0_21 = arith.constant 0 : index
    %20 = vector.load %arg4[%c1_19, %c0_20, %c0_21] : memref<4x16x16xf32, #tpu.memory_space<vmem>>, vector<1x16x16xf32>
    %21 = vector.shape_cast %20 : vector<1x16x16xf32> to vector<16x16xf32>
    %22 = vector.shape_cast %19 : vector<16x16xf32> to vector<1x16x16xf32>
    tpu.vector_store %arg4[%c1_19, %c0_20, %c0_21], %22 {strides = array<i32>} : memref<4x16x16xf32, #tpu.memory_space<vmem>>, vector<1x16x16xf32>,
    %c2 = arith.constant 2 : index
    %c0_22 = arith.constant 0 : index
    %c0_23 = arith.constant 0 : index
    %23 = vector.load %arg5[%c2, %c0_22, %c0_23] : memref<4x16x128xbf16, #tpu.memory_space<vmem>>, vector<1x16x128xbf16>
    %24 = vector.shape_cast %23 : vector<1x16x128xbf16> to vector<16x128xbf16>
    %cst_24 = arith.constant dense<0.000000e+00> : vector<16x128xf32>
    %25 = tpu.matmul %8, %24, %cst_24 {dimension_numbers = #tpu.dot_dimension_numbers<[1], [0], [0], [1], [0, 0, 1, 1], [], []>} : vector<16x16xbf16>, vector<16x128xbf16>, vector<16x128xf32> -> vector<16x128xf32>
    %26 = vector.extract_strided_slice %25 {offsets = [0, 0], sizes = [16, 16], strides = [1, 1]} : vector<16x128xf32> to vector<16x16xf32>
    %c2_25 = arith.constant 2 : index
    %c0_26 = arith.constant 0 : index
    %c0_27 = arith.constant 0 : index
    %27 = vector.load %arg4[%c2_25, %c0_26, %c0_27] : memref<4x16x16xf32, #tpu.memory_space<vmem>>, vector<1x16x16xf32>
    %28 = vector.shape_cast %27 : vector<1x16x16xf32> to vector<16x16xf32>
    %29 = vector.shape_cast %26 : vector<16x16xf32> to vector<1x16x16xf32>
    tpu.vector_store %arg4[%c2_25, %c0_26, %c0_27], %29 {strides = array<i32>} : memref<4x16x16xf32, #tpu.memory_space<vmem>>, vector<1x16x16xf32>,
    %c3 = arith.constant 3 : index
    %c0_28 = arith.constant 0 : index
    %c0_29 = arith.constant 0 : index
    %30 = vector.load %arg5[%c3, %c0_28, %c0_29] : memref<4x16x128xbf16, #tpu.memory_space<vmem>>, vector<1x16x128xbf16>
    %31 = vector.shape_cast %30 : vector<1x16x128xbf16> to vector<16x128xbf16>
    %cst_30 = arith.constant dense<0.000000e+00> : vector<16x128xf32>
    %32 = tpu.matmul %8, %31, %cst_30 {dimension_numbers = #tpu.dot_dimension_numbers<[1], [0], [0], [1], [0, 0, 1, 1], [], []>} : vector<16x16xbf16>, vector<16x128xbf16>, vector<16x128xf32> -> vector<16x128xf32>
    %33 = vector.extract_strided_slice %32 {offsets = [0, 0], sizes = [16, 16], strides = [1, 1]} : vector<16x128xf32> to vector<16x16xf32>
    %c3_31 = arith.constant 3 : index
    %c0_32 = arith.constant 0 : index
    %c0_33 = arith.constant 0 : index
    %34 = vector.load %arg4[%c3_31, %c0_32, %c0_33] : memref<4x16x16xf32, #tpu.memory_space<vmem>>, vector<1x16x16xf32>
    %35 = vector.shape_cast %34 : vector<1x16x16xf32> to vector<16x16xf32>
    %36 = vector.shape_cast %33 : vector<16x16xf32> to vector<1x16x16xf32>
    tpu.vector_store %arg4[%c3_31, %c0_32, %c0_33], %36 {strides = array<i32>} : memref<4x16x16xf32, #tpu.memory_space<vmem>>, vector<1x16x16xf32>,
    return
  }
  func.func @transform_0(%arg0: i32) -> (i32, i32, i32) {
    %c0_i32 = arith.constant 0 : i32
    %c0_i32_0 = arith.constant 0 : i32
    %c0_i32_1 = arith.constant 0 : i32
    return %arg0, %c0_i32, %c0_i32_0 : i32, i32, i32
  }
  func.func @transform_1(%arg0: i32) -> (i32, i32) {
    %c0_i32 = arith.constant 0 : i32
    %c0_i32_0 = arith.constant 0 : i32
    %c0_i32_1 = arith.constant 0 : i32
    return %c0_i32, %c0_i32_0 : i32, i32
  }
  func.func @transform_2(%arg0: i32) -> (i32, i32) {
    %c0_i32 = arith.constant 0 : i32
    %c0_i32_0 = arith.constant 0 : i32
    %c0_i32_1 = arith.constant 0 : i32
    return %c0_i32, %c0_i32_0 : i32, i32
  }
  func.func @transform_3(%arg0: i32) -> (i32, i32, i32) {
    %c0_i32 = arith.constant 0 : i32
    %c0_i32_0 = arith.constant 0 : i32
    %c0_i32_1 = arith.constant 0 : i32
    return %arg0, %c0_i32, %c0_i32_0 : i32, i32, i32
  }
}

</mosaic_0001>

<llo_original>
// kernel: tpu_custom_call.1
$region0: #{tpu_custom_call.1}
  #allocation0 [shape = 'u32[]', space=smem, size = 0x4, offset = 0x4, fixed_abs, tag = 'smem constant byte address 0x4 - core index']
  #allocation1 [shape = 'u32[144,128]{1,0:T(1,128)}', space=vmem, size = 0x12000, scoped, tag = 'internal scratch']
  #allocation2 [shape = 'bf16[4,16,128]{2,1,0:T(16,128)(2,1)}', space=vmem, size = 0x4000, scoped, tag = 'scratch operand']
  %s0 = inlined_call_operand.hbm [shape: f32[8,16,16], index: 0, kind: input, shape index: {}]
  %s1 = inlined_call_operand.hbm [shape: bf16[16,16], index: 1, kind: input, shape index: {}]
  %s2 = inlined_call_operand.hbm [shape: bf16[16,128], index: 2, kind: input, shape index: {}]
  %s3 = inlined_call_operand.hbm [shape: f32[8,16,16], index: 3, kind: output, shape index: {}]
  %s4 = sld [smem:[#allocation0]]
  $region57: #{tpu_custom_call.1} parent=0
    _
  %s6 = ssub.s32 1, %s4
  %s7 = scalar_select 0, %s6, %s4
  $region1: #{tpu_custom_call.1} parent=0
    #allocation3 [shape = 'u8[65536]{0}', space=vmem, size = 0x10000, scoped, tag = 'input window, operand 0']
    #allocation4 [shape = 's32[2]{0}', space=sflag, size = 0x8, scoped, tag = 'scoped memory for tpu_custom_call.1']
    #allocation5 [shape = 's32[2]{0}', space=sflag, size = 0x8, scoped, tag = 'scoped memory for tpu_custom_call.1']
    #allocation6 [shape = 'u8[4096]{0}', space=vmem, size = 0x1000, scoped, tag = 'input window, operand 1, single buffered']
    #allocation7 [shape = 's32[1]{0}', space=sflag, size = 0x4, scoped, tag = 'scoped memory for tpu_custom_call.1']
    #allocation8 [shape = 'u8[4096]{0}', space=vmem, size = 0x1000, scoped, tag = 'input window, operand 2, single buffered']
    #allocation9 [shape = 'u8[65536]{0}', space=vmem, size = 0x10000, scoped, tag = 'output window, operand 0']
    %8 = vsyncpa [#allocation4], 0
    %s9 = scalar_lea.sflag [#allocation4], 1
    %10 = vsyncpa %s9, 0
    %11 = vsyncpa [#allocation7], 0
    %12 = vsyncpa [#allocation5], 0
    %s13 = scalar_lea.sflag [#allocation5], 1
    %14 = vsyncpa %s13, 0
    loop: start=0, step=1, limit=4
    $region2: #{tpu_custom_call.1} parent=1 // loop_pre_header
      _
    $region3: #{tpu_custom_call.1} parent=1 // loop_header
      %s16 = sphi 0, %s20
      %p17 = scmp.ge.s32.totalorder %s16, 4
      %s26 = sphi 0, %s28
      %s29 = sphi 0, %s26
      %s30 = sphi 0, %s29
      %s46 = sphi 0, %s30
      %s50 = sphi 0, %s50
      %s52 = sphi 0, %s50
      %s53 = sphi 0, %s52
      %s67 = sphi 0, %s53
      %s71 = sphi 0, %s71
      %s73 = sphi 0, %s71
      %s74 = sphi 0, %s73
      %s88 = sphi 0, %s74
      %s94 = sphi 0, %s96
      %s97 = sphi 0, %s94
      %s98 = sphi 0, %s97
      %s114 = sphi 0, %s98
    $region4: #{tpu_custom_call.1} parent=1 // loop_header_branch
      %19 = sbr.rel (%p17) target = $region8
    $region5: #{tpu_custom_call.1} parent=1 // loop_body
      %s21 = ssub.s32 %s16, 1
      %s22 = ssub.s32 %s16, 2
      %s23 = sadd.s32 %s16, 1
      %s24 = ssub.s32 %s16, %s23
      %p25 = scmp.eq.s32.totalorder %s24, 0
      %s27 = sadd.s32 %s26, 1
      %s28 = scalar_select %p25, %s26, %s27
      %p31 = pneg %p25
      %p32 = scmp.eq.s32.totalorder %s16, 1
      %p33 = por %p31, %p32
      %p34 = scmp.ne.s32.totalorder %s26, %s29
      %p35 = scmp.eq.s32.totalorder %s16, 0
      %p36 = por %p34, %p35
      %p37 = scmp.ne.s32.totalorder %s26, %s29
      %p38 = scmp.eq.s32.totalorder %s21, 1
      %p39 = por %p37, %p38
      %p40 = scmp.ne.s32.totalorder %s29, %s30
      %p41 = scmp.eq.s32.totalorder %s21, 0
      %p42 = por %p40, %p41
      %p43 = scmp.ne.s32.totalorder %s29, %s30
      %p44 = scmp.eq.s32.totalorder %s22, 1
      %p45 = por %p43, %p44
      %p47 = scmp.ne.s32.totalorder %s30, %s46
      %p48 = scmp.eq.s32.totalorder %s22, 0
      %p49 = por %p47, %p48
      %s51 = sadd.s32 %s50, 1
      %p54 = scmp.eq.s32.totalorder %s16, 1
      %p55 = scmp.ne.s32.totalorder %s50, %s52
      %p56 = scmp.eq.s32.totalorder %s16, 0
      %p57 = por %p55, %p56
      %p58 = scmp.ne.s32.totalorder %s50, %s52
      %p59 = scmp.eq.s32.totalorder %s21, 1
      %p60 = por %p58, %p59
      %p61 = scmp.ne.s32.totalorder %s52, %s53
      %p62 = scmp.eq.s32.totalorder %s21, 0
      %p63 = por %p61, %p62
      %p64 = scmp.ne.s32.totalorder %s52, %s53
      %p65 = scmp.eq.s32.totalorder %s22, 1
      %p66 = por %p64, %p65
      %p68 = scmp.ne.s32.totalorder %s53, %s67
      %p69 = scmp.eq.s32.totalorder %s22, 0
      %p70 = por %p68, %p69
      %s72 = sadd.s32 %s71, 1
      %p75 = scmp.eq.s32.totalorder %s16, 1
      %p76 = scmp.ne.s32.totalorder %s71, %s73
      %p77 = scmp.eq.s32.totalorder %s16, 0
      %p78 = por %p76, %p77
      %p79 = scmp.ne.s32.totalorder %s71, %s73
      %p80 = scmp.eq.s32.totalorder %s21, 1
      %p81 = por %p79, %p80
      %p82 = scmp.ne.s32.totalorder %s73, %s74
      %p83 = scmp.eq.s32.totalorder %s21, 0
      %p84 = por %p82, %p83
      %p85 = scmp.ne.s32.totalorder %s73, %s74
      %p86 = scmp.eq.s32.totalorder %s22, 1
      %p87 = por %p85, %p86
      %p89 = scmp.ne.s32.totalorder %s74, %s88
      %p90 = scmp.eq.s32.totalorder %s22, 0
      %p91 = por %p89, %p90
      %s92 = ssub.s32 %s16, %s23
      %p93 = scmp.eq.s32.totalorder %s92, 0
      %s95 = sadd.s32 %s94, 1
      %s96 = scalar_select %p93, %s94, %s95
      %p99 = pneg %p93
      %p100 = scmp.eq.s32.totalorder %s16, 1
      %p101 = por %p99, %p100
      %p102 = scmp.ne.s32.totalorder %s94, %s97
      %p103 = scmp.eq.s32.totalorder %s16, 0
      %p104 = por %p102, %p103
      %p105 = scmp.ne.s32.totalorder %s94, %s97
      %p106 = scmp.eq.s32.totalorder %s21, 1
      %p107 = por %p105, %p106
      %p108 = scmp.ne.s32.totalorder %s97, %s98
      %p109 = scmp.eq.s32.totalorder %s21, 0
      %p110 = por %p108, %p109
      %p111 = scmp.ne.s32.totalorder %s97, %s98
      %p112 = scmp.eq.s32.totalorder %s22, 1
      %p113 = por %p111, %p112
      %p115 = scmp.ne.s32.totalorder %s98, %s114
      %p116 = scmp.eq.s32.totalorder %s22, 0
      %p117 = por %p115, %p116
      %p118 = scmp.le.s32.totalorder 1, %s16
      %p119 = scmp.lt.s32.totalorder %s16, 3
      %p120 = pnand %p118, %p119
      %p121 = pneg %p120
      // Predicated region
      $region9: #{tpu_custom_call.1} parent=5 // pred_check
        _
      $region10: #{tpu_custom_call.1} parent=5 // pred_check_branch
        %123 = sbr.rel (%p120) target = $region12
      $region11: #{tpu_custom_call.1} parent=5 // pred_region
        %s124 = ssub.s32 %s16, 1
        // Predicated region
        $region13: #{tpu_custom_call.1} parent=11 // pred_check
          %p125 = pneg %p63
        $region14: #{tpu_custom_call.1} parent=11 // pred_check_branch
          %127 = sbr.rel (%p125) target = $region16
        $region15: #{tpu_custom_call.1} parent=11 // pred_region
          %s129 = ssub.s32 128, 128
          %130 = vsyncadd [#allocation7], %s129
          %s131 = sshll.u32 [#allocation6], 4
          %s132 = int_to_ptr.vmem [resolvable:$true] %s131
          %137 = dma.hbm_to_vmem [thread:$0]  %s1, 128, %s132, [#allocation7], 64, 64, 4
        $region16: #{tpu_custom_call.1} parent=11 // pred_fallthru
          _
        // Predicated region
        $region17: #{tpu_custom_call.1} parent=11 // pred_check
          %p138 = pneg %p84
        $region18: #{tpu_custom_call.1} parent=11 // pred_check_branch
          %140 = sbr.rel (%p138) target = $region20
        $region19: #{tpu_custom_call.1} parent=11 // pred_region
          %s142 = ssub.s32 128, 128
          %143 = vsyncadd [#allocation7], %s142
          %s144 = sshll.u32 [#allocation8], 4
          %s145 = int_to_ptr.vmem [resolvable:$true] %s144
          %150 = dma.hbm_to_vmem [thread:$0]  %s2, 128, %s145, [#allocation7], 64, 64, 4
        $region20: #{tpu_custom_call.1} parent=11 // pred_fallthru
          _
      $region12: #{tpu_custom_call.1} parent=5 // pred_fallthru
        _
      %p151 = scmp.lt.s32.totalorder %s16, 2
      // Predicated region
      $region21: #{tpu_custom_call.1} parent=5 // pred_check
        %p152 = pneg %p151
      $region22: #{tpu_custom_call.1} parent=5 // pred_check_branch
        %154 = sbr.rel (%p152) target = $region24
      $region23: #{tpu_custom_call.1} parent=5 // pred_region
        // Predicated region
        $region25: #{tpu_custom_call.1} parent=23 // pred_check
          %p155 = pneg %p36
        $region26: #{tpu_custom_call.1} parent=23 // pred_check_branch
          %157 = sbr.rel (%p155) target = $region28
        $region27: #{tpu_custom_call.1} parent=23 // pred_region
          %s158 = sand.u32 %s26, 1
          %s159 = scalar_lea.sflag [#allocation4], %s158
          %s160 = sand.u32 %s26, 1
          %s161 = smul.addr %s160, 64
          %s162 = scalar_lea.vmem [#allocation3], %s161
          %s163 = smul.u32 4, %s16
          %s165 = ssub.s32 1024, 1024
          %166 = vsyncadd %s159, %s165
          %s167 = smul.addr %s163, 2
          %s168 = smul.addr %s167, 128
          %s169 = scalar_lea.hbm %s0, %s168
          %s170 = sshll.u32 %s162, 4
          %s171 = int_to_ptr.vmem [resolvable:$true] %s170
          %176 = dma.hbm_to_vmem [thread:$0]  %s169, 1024, %s171, %s159, 128, 128, 8
        $region28: #{tpu_custom_call.1} parent=23 // pred_fallthru
          _
      $region24: #{tpu_custom_call.1} parent=5 // pred_fallthru
        _
      %p177 = scmp.le.s32.totalorder 1, %s16
      %p178 = scmp.lt.s32.totalorder %s16, 3
      %p179 = pnand %p177, %p178
      %p180 = pneg %p179
      // Predicated region
      $region29: #{tpu_custom_call.1} parent=5 // pred_check
        _
      $region30: #{tpu_custom_call.1} parent=5 // pred_check_branch
        %182 = sbr.rel (%p179) target = $region32
      $region31: #{tpu_custom_call.1} parent=5 // pred_region
        %s183 = ssub.s32 %s16, 1
        %s184 = sand.u32 %s29, 1
        %s185 = scalar_lea.sflag [#allocation4], %s184
        %s186 = sand.u32 %s29, 1
        %s187 = smul.addr %s186, 64
        %s188 = scalar_lea.vmem [#allocation3], %s187
        // Predicated region
        $region33: #{tpu_custom_call.1} parent=31 // pred_check
          %p189 = pneg %p42
        $region34: #{tpu_custom_call.1} parent=31 // pred_check_branch
          %191 = sbr.rel (%p189) target = $region36
        $region35: #{tpu_custom_call.1} parent=31 // pred_region
          %192 = dma.done %s185, 1024
        $region36: #{tpu_custom_call.1} parent=31 // pred_fallthru
          _
        // Predicated region
        $region37: #{tpu_custom_call.1} parent=31 // pred_check
          %p193 = pneg %p63
        $region38: #{tpu_custom_call.1} parent=31 // pred_check_branch
          %195 = sbr.rel (%p193) target = $region40
        $region39: #{tpu_custom_call.1} parent=31 // pred_region
          %196 = dma.done [#allocation7], 128
        $region40: #{tpu_custom_call.1} parent=31 // pred_fallthru
          _
        // Predicated region
        $region41: #{tpu_custom_call.1} parent=31 // pred_check
          %p197 = pneg %p84
        $region42: #{tpu_custom_call.1} parent=31 // pred_check_branch
          %199 = sbr.rel (%p197) target = $region44
        $region43: #{tpu_custom_call.1} parent=31 // pred_region
          %200 = dma.done [#allocation7], 128
        $region44: #{tpu_custom_call.1} parent=31 // pred_fallthru
          _
        %s201 = sand.u32 %s29, 1
        %s202 = scalar_lea.sflag [#allocation4], %s201
        %s203 = sand.u32 %s29, 1
        %s204 = smul.addr %s203, 64
        %s205 = scalar_lea.vmem [#allocation3], %s204
        %p206 = pneg %p42
        %p207 = pneg %p39
        %p208 = pneg %p63
        %p209 = pneg %p60
        %p210 = pneg %p84
        %p211 = pneg %p81
        %p212 = pneg %p110
        %p213 = pneg %p107
        %s214 = sand.u32 %s97, 1
        %s215 = scalar_lea.sflag [#allocation5], %s214
        %s216 = sand.u32 %s97, 1
        %s217 = smul.addr %s216, 64
        %s218 = scalar_lea.vmem [#allocation9], %s217
        %s219 = smul.u32 4, %s21
        %s220 = smul.u32 4, %s21
        %v222 = vld [vmem:[%s188] sm:$0xff]
        %v223 = vld [vmem:[%s188 + $0x8] sm:$0xff]
        %v224 = vld [vmem:[%s188 + $0x10] sm:$0xff]
        %v225 = vld [vmem:[%s188 + $0x18] sm:$0xff]
        %v226 = vld [vmem:[%s188 + $0x20] sm:$0xff]
        %v227 = vld [vmem:[%s188 + $0x28] sm:$0xff]
        %v228 = vld [vmem:[%s188 + $0x30] sm:$0xff]
        %v229 = vld [vmem:[%s188 + $0x38] sm:$0xff]
        %v230 = vpack.c.bf16 %v223, %v222
        %v231 = vpack.c.bf16 %v225, %v224
        %v232 = vpack.c.bf16 %v227, %v226
        %v233 = vpack.c.bf16 %v229, %v228
        %v234 = vld [vmem:[#allocation8] sm:$0xf]
        %v235 = vld [vmem:[#allocation8 + $0x4] sm:$0xf]
        %v238 = vunpack.c.l.b16 %v234
        %v239 = vunpack.c.l.b16 %v235
        %v240 = vpack.c.b16 %v239, %v238
        %vm242 = vcmask 130048
        %v244 = vsel %vm242, %v230, 0
        %v247 = vsel %vm242, %v231, 0
        %v250 = vsel %vm242, %v232, 0
        %v253 = vsel %vm242, %v233, 0
        %255 = vmatprep.subr.bf16.mxu0 0
        %256 = vmatpush1.bf16.msra.mxu0 %v240
        %257 = vmatprep.subr.bf16.mxu0 0
        %258 = vmatpush1.bf16.msra.mxu0 0
        %259 = vmatprep.subr.bf16.mxu0 0
        %260 = vmatpush1.bf16.msra.mxu0 0
        %261 = vmatprep.subr.bf16.mxu0 0
        %262 = vmatpush1.bf16.msra.mxu0 0
        %263 = vmatprep.subr.bf16.mxu0 0
        %264 = vmatpush1.bf16.msra.mxu0 0
        %265 = vmatprep.subr.bf16.mxu0 0
        %266 = vmatpush1.bf16.msra.mxu0 0
        %267 = vmatprep.subr.bf16.mxu0 0
        %268 = vmatpush1.bf16.msra.mxu0 0
        %269 = vmatprep.subr.bf16.mxu0 0
        %270 = vmatpush1.bf16.msra.mxu0 0
        %271 = vmatprep.subr.bf16.mxu0 0
        %272 = vmatpush1.bf16.msra.mxu0 0
        %273 = vmatprep.subr.bf16.mxu0 0
        %274 = vmatpush1.bf16.msra.mxu0 0
        %275 = vmatprep.subr.bf16.mxu0 0
        %276 = vmatpush1.bf16.msra.mxu0 0
        %277 = vmatprep.subr.bf16.mxu0 0
        %278 = vmatpush1.bf16.msra.mxu0 0
        %279 = vmatprep.subr.bf16.mxu0 0
        %280 = vmatpush1.bf16.msra.mxu0 0
        %281 = vmatprep.subr.bf16.mxu0 0
        %282 = vmatpush1.bf16.msra.mxu0 0
        %283 = vmatprep.subr.bf16.mxu0 0
        %284 = vmatpush1.bf16.msra.mxu0 0
        %285 = vmatprep.subr.bf16.mxu0 0
        %286 = vmatpush1.bf16.msra.mxu0 0
        %287 = vmatprep.mubr.bf16.mxu0 0
        %288 = vmatmul.mubr.bf16.gmra.mrb[0].mxu0 %v244
        %v289 = vpop.f32.mrb[0].mxu0
        %v290 = vadd.f32 0.0, %v289
        %v291 = vpop.f32.mrb[0].mxu0
        %v292 = vpop.f32.mrb[0].mxu0
        %v293 = vadd.f32 0.0, %v292
        %v294 = vpop.f32.mrb[0].mxu0
        %295 = vmatprep.mubr.bf16.mxu0 0
        %296 = vmatmul.mubr.bf16.gmra.mrb[0].mxu0 %v247
        %v297 = vpop.f32.mrb[0].mxu0
        %v298 = vadd.f32 0.0, %v297
        %v299 = vpop.f32.mrb[0].mxu0
        %v300 = vpop.f32.mrb[0].mxu0
        %v301 = vadd.f32 0.0, %v300
        %v302 = vpop.f32.mrb[0].mxu0
        %303 = vmatprep.mubr.bf16.mxu0 0
        %304 = vmatmul.mubr.bf16.gmra.mrb[0].mxu0 %v250
        %v305 = vpop.f32.mrb[0].mxu0
        %v306 = vadd.f32 0.0, %v305
        %v307 = vpop.f32.mrb[0].mxu0
        %v308 = vpop.f32.mrb[0].mxu0
        %v309 = vadd.f32 0.0, %v308
        %v310 = vpop.f32.mrb[0].mxu0
        %311 = vmatprep.mubr.bf16.mxu0 0
        %312 = vmatmul.mubr.bf16.gmra.mrb[0].mxu0 %v253
        %v313 = vpop.f32.mrb[0].mxu0
        %v314 = vadd.f32 0.0, %v313
        %v315 = vpop.f32.mrb[0].mxu0
        %v316 = vpop.f32.mrb[0].mxu0
        %v317 = vadd.f32 0.0, %v316
        %v318 = vpop.f32.mrb[0].mxu0
        %319 = vdwg.mxu0
        %v320 = vpack.c.bf16 %v293, %v290
        %v321 = vpack.c.bf16 %v301, %v298
        %v322 = vpack.c.bf16 %v309, %v306
        %v323 = vpack.c.bf16 %v317, %v314
        %324 = vst [vmem:[#allocation2] sm:$0xff] %v320
        %325 = vst [vmem:[#allocation2 + $0x8] sm:$0xff] %v321
        %326 = vst [vmem:[#allocation2 + $0x10] sm:$0xff] %v322
        %327 = vst [vmem:[#allocation2 + $0x18] sm:$0xff] %v323
        %v328 = vld [vmem:[#allocation6] sm:$0xf]
        %v329 = vld [vmem:[#allocation6 + $0x4] sm:$0xf]
        %v330 = vld [vmem:[#allocation2] sm:$0xff]
        %v333 = vunpack.c.l.b16 %v328
        %v334 = vunpack.c.l.b16 %v329
        %v335 = vpack.c.b16 %v334, %v333
        %v337 = vsel %vm242, %v335, 0
        %339 = vmatprep.subr.bf16.mxu0 0
        %340 = vmatpush1.bf16.msra.mxu0 %v330
        %341 = vmatprep.subr.bf16.mxu0 0
        %342 = vmatpush1.bf16.msra.mxu0 0
        %343 = vmatprep.subr.bf16.mxu0 0
        %344 = vmatpush1.bf16.msra.mxu0 0
        %345 = vmatprep.subr.bf16.mxu0 0
        %346 = vmatpush1.bf16.msra.mxu0 0
        %347 = vmatprep.subr.bf16.mxu0 0
        %348 = vmatpush1.bf16.msra.mxu0 0
        %349 = vmatprep.subr.bf16.mxu0 0
        %350 = vmatpush1.bf16.msra.mxu0 0
        %351 = vmatprep.subr.bf16.mxu0 0
        %352 = vmatpush1.bf16.msra.mxu0 0
        %353 = vmatprep.subr.bf16.mxu0 0
        %354 = vmatpush1.bf16.msra.mxu0 0
        %355 = vmatprep.subr.bf16.mxu0 0
        %356 = vmatpush1.bf16.msra.mxu0 0
        %357 = vmatprep.subr.bf16.mxu0 0
        %358 = vmatpush1.bf16.msra.mxu0 0
        %359 = vmatprep.subr.bf16.mxu0 0
        %360 = vmatpush1.bf16.msra.mxu0 0
        %361 = vmatprep.subr.bf16.mxu0 0
        %362 = vmatpush1.bf16.msra.mxu0 0
        %363 = vmatprep.subr.bf16.mxu0 0
        %364 = vmatpush1.bf16.msra.mxu0 0
        %365 = vmatprep.subr.bf16.mxu0 0
        %366 = vmatpush1.bf16.msra.mxu0 0
        %367 = vmatprep.subr.bf16.mxu0 0
        %368 = vmatpush1.bf16.msra.mxu0 0
        %369 = vmatprep.subr.bf16.mxu0 0
        %370 = vmatpush1.bf16.msra.mxu0 0
        %371 = vmatprep.mubr.bf16.mxu0 0
        %372 = vmatmul.mubr.bf16.gmra.mrb[0].mxu0 %v337
        %v373 = vpop.f32.mrb[0].mxu0
        %v374 = vadd.f32 0.0, %v373
        %v375 = vpop.f32.mrb[0].mxu0
        %v376 = vpop.f32.mrb[0].mxu0
        %v377 = vadd.f32 0.0, %v376
        %v378 = vpop.f32.mrb[0].mxu0
        %379 = vdwg.mxu0
        %380 = vst.msk [vmem:[%s218] sm:$0xff] %vm242, %v374
        %381 = vst.msk [vmem:[%s218 + $0x8] sm:$0xff] %vm242, %v377
        %s382 = scalar_lea.vmem [#allocation2], 8
        %v383 = vld [vmem:[%s382] sm:$0xff]
        %384 = vmatprep.subr.bf16.mxu0 0
        %385 = vmatpush1.bf16.msra.mxu0 %v383
        %386 = vmatprep.subr.bf16.mxu0 0
        %387 = vmatpush1.bf16.msra.mxu0 0
        %388 = vmatprep.subr.bf16.mxu0 0
        %389 = vmatpush1.bf16.msra.mxu0 0
        %390 = vmatprep.subr.bf16.mxu0 0
        %391 = vmatpush1.bf16.msra.mxu0 0
        %392 = vmatprep.subr.bf16.mxu0 0
        %393 = vmatpush1.bf16.msra.mxu0 0
        %394 = vmatprep.subr.bf16.mxu0 0
        %395 = vmatpush1.bf16.msra.mxu0 0
        %396 = vmatprep.subr.bf16.mxu0 0
        %397 = vmatpush1.bf16.msra.mxu0 0
        %398 = vmatprep.subr.bf16.mxu0 0
        %399 = vmatpush1.bf16.msra.mxu0 0
        %400 = vmatprep.subr.bf16.mxu0 0
        %401 = vmatpush1.bf16.msra.mxu0 0
        %402 = vmatprep.subr.bf16.mxu0 0
        %403 = vmatpush1.bf16.msra.mxu0 0
        %404 = vmatprep.subr.bf16.mxu0 0
        %405 = vmatpush1.bf16.msra.mxu0 0
        %406 = vmatprep.subr.bf16.mxu0 0
        %407 = vmatpush1.bf16.msra.mxu0 0
        %408 = vmatprep.subr.bf16.mxu0 0
        %409 = vmatpush1.bf16.msra.mxu0 0
        %410 = vmatprep.subr.bf16.mxu0 0
        %411 = vmatpush1.bf16.msra.mxu0 0
        %412 = vmatprep.subr.bf16.mxu0 0
        %413 = vmatpush1.bf16.msra.mxu0 0
        %414 = vmatprep.subr.bf16.mxu0 0
        %415 = vmatpush1.bf16.msra.mxu0 0
        %416 = vmatprep.mubr.bf16.mxu0 0
        %417 = vmatmul.mubr.bf16.gmra.mrb[0].mxu0 %v337
        %v418 = vpop.f32.mrb[0].mxu0
        %v419 = vadd.f32 0.0, %v418
        %v420 = vpop.f32.mrb[0].mxu0
        %v421 = vpop.f32.mrb[0].mxu0
        %v422 = vadd.f32 0.0, %v421
        %v423 = vpop.f32.mrb[0].mxu0
        %424 = vdwg.mxu0
        %s425 = scalar_lea.vmem %s218, 16 [#allocation9]
        %426 = vst.msk [vmem:[%s425] sm:$0xff] %vm242, %v419
        %427 = vst.msk [vmem:[%s425 + $0x8] sm:$0xff] %vm242, %v422
        %s428 = scalar_lea.vmem [#allocation2], 16
        %v429 = vld [vmem:[%s428] sm:$0xff]
        %430 = vmatprep.subr.bf16.mxu0 0
        %431 = vmatpush1.bf16.msra.mxu0 %v429
        %432 = vmatprep.subr.bf16.mxu0 0
        %433 = vmatpush1.bf16.msra.mxu0 0
        %434 = vmatprep.subr.bf16.mxu0 0
        %435 = vmatpush1.bf16.msra.mxu0 0
        %436 = vmatprep.subr.bf16.mxu0 0
        %437 = vmatpush1.bf16.msra.mxu0 0
        %438 = vmatprep.subr.bf16.mxu0 0
        %439 = vmatpush1.bf16.msra.mxu0 0
        %440 = vmatprep.subr.bf16.mxu0 0
        %441 = vmatpush1.bf16.msra.mxu0 0
        %442 = vmatprep.subr.bf16.mxu0 0
        %443 = vmatpush1.bf16.msra.mxu0 0
        %444 = vmatprep.subr.bf16.mxu0 0
        %445 = vmatpush1.bf16.msra.mxu0 0
        %446 = vmatprep.subr.bf16.mxu0 0
        %447 = vmatpush1.bf16.msra.mxu0 0
        %448 = vmatprep.subr.bf16.mxu0 0
        %449 = vmatpush1.bf16.msra.mxu0 0
        %450 = vmatprep.subr.bf16.mxu0 0
        %451 = vmatpush1.bf16.msra.mxu0 0
        %452 = vmatprep.subr.bf16.mxu0 0
        %453 = vmatpush1.bf16.msra.mxu0 0
        %454 = vmatprep.subr.bf16.mxu0 0
        %455 = vmatpush1.bf16.msra.mxu0 0
        %456 = vmatprep.subr.bf16.mxu0 0
        %457 = vmatpush1.bf16.msra.mxu0 0
        %458 = vmatprep.subr.bf16.mxu0 0
        %459 = vmatpush1.bf16.msra.mxu0 0
        %460 = vmatprep.subr.bf16.mxu0 0
        %461 = vmatpush1.bf16.msra.mxu0 0
        %462 = vmatprep.mubr.bf16.mxu0 0
        %463 = vmatmul.mubr.bf16.gmra.mrb[0].mxu0 %v337
        %v464 = vpop.f32.mrb[0].mxu0
        %v465 = vadd.f32 0.0, %v464
        %v466 = vpop.f32.mrb[0].mxu0
        %v467 = vpop.f32.mrb[0].mxu0
        %v468 = vadd.f32 0.0, %v467
        %v469 = vpop.f32.mrb[0].mxu0
        %470 = vdwg.mxu0
        %s471 = scalar_lea.vmem %s218, 32 [#allocation9]
        %472 = vst.msk [vmem:[%s471] sm:$0xff] %vm242, %v465
        %473 = vst.msk [vmem:[%s471 + $0x8] sm:$0xff] %vm242, %v468
        %s474 = scalar_lea.vmem [#allocation2], 24
        %v475 = vld [vmem:[%s474] sm:$0xff]
        %476 = vmatprep.subr.bf16.mxu0 0
        %477 = vmatpush1.bf16.msra.mxu0 %v475
        %478 = vmatprep.subr.bf16.mxu0 0
        %479 = vmatpush1.bf16.msra.mxu0 0
        %480 = vmatprep.subr.bf16.mxu0 0
        %481 = vmatpush1.bf16.msra.mxu0 0
        %482 = vmatprep.subr.bf16.mxu0 0
        %483 = vmatpush1.bf16.msra.mxu0 0
        %484 = vmatprep.subr.bf16.mxu0 0
        %485 = vmatpush1.bf16.msra.mxu0 0
        %486 = vmatprep.subr.bf16.mxu0 0
        %487 = vmatpush1.bf16.msra.mxu0 0
        %488 = vmatprep.subr.bf16.mxu0 0
        %489 = vmatpush1.bf16.msra.mxu0 0
        %490 = vmatprep.subr.bf16.mxu0 0
        %491 = vmatpush1.bf16.msra.mxu0 0
        %492 = vmatprep.subr.bf16.mxu0 0
        %493 = vmatpush1.bf16.msra.mxu0 0
        %494 = vmatprep.subr.bf16.mxu0 0
        %495 = vmatpush1.bf16.msra.mxu0 0
        %496 = vmatprep.subr.bf16.mxu0 0
        %497 = vmatpush1.bf16.msra.mxu0 0
        %498 = vmatprep.subr.bf16.mxu0 0
        %499 = vmatpush1.bf16.msra.mxu0 0
        %500 = vmatprep.subr.bf16.mxu0 0
        %501 = vmatpush1.bf16.msra.mxu0 0
        %502 = vmatprep.subr.bf16.mxu0 0
        %503 = vmatpush1.bf16.msra.mxu0 0
        %504 = vmatprep.subr.bf16.mxu0 0
        %505 = vmatpush1.bf16.msra.mxu0 0
        %506 = vmatprep.subr.bf16.mxu0 0
        %507 = vmatpush1.bf16.msra.mxu0 0
        %508 = vmatprep.mubr.bf16.mxu0 0
        %509 = vmatmul.mubr.bf16.gmra.mrb[0].mxu0 %v337
        %v510 = vpop.f32.mrb[0].mxu0
        %v511 = vadd.f32 0.0, %v510
        %v512 = vpop.f32.mrb[0].mxu0
        %v513 = vpop.f32.mrb[0].mxu0
        %v514 = vadd.f32 0.0, %v513
        %v515 = vpop.f32.mrb[0].mxu0
        %516 = vdwg.mxu0
        %s517 = scalar_lea.vmem %s218, 48 [#allocation9]
        %518 = vst.msk [vmem:[%s517] sm:$0xff] %vm242, %v511
        %519 = vst.msk [vmem:[%s517 + $0x8] sm:$0xff] %vm242, %v514
        %s520 = sand.u32 %s97, 1
        %s521 = scalar_lea.sflag [#allocation5], %s520
        %s522 = sand.u32 %s97, 1
        %s523 = smul.addr %s522, 64
        %s524 = scalar_lea.vmem [#allocation9], %s523
        // Predicated region
        $region45: #{tpu_custom_call.1} parent=31 // pred_check
          %p525 = pneg %p107
        $region46: #{tpu_custom_call.1} parent=31 // pred_check_branch
          %527 = sbr.rel (%p525) target = $region48
        $region47: #{tpu_custom_call.1} parent=31 // pred_region
          %s528 = smul.u32 4, %s21
          %s530 = ssub.s32 1024, 1024
          %531 = vsyncadd %s521, %s530
          %s532 = smul.addr %s528, 2
          %s533 = smul.addr %s532, 128
          %s534 = scalar_lea.hbm %s3, %s533
          %s535 = sshll.u32 %s524, 4
          %s536 = int_to_ptr.vmem [resolvable:$true] %s535
          %541 = dma.vmem_to_hbm [thread:$0]  %s536, 1024, %s534, %s521, 128, 128, 8
        $region48: #{tpu_custom_call.1} parent=31 // pred_fallthru
          _
      $region32: #{tpu_custom_call.1} parent=5 // pred_fallthru
        _
      %p542 = scmp.le.s32.totalorder 2, %s16
      // Predicated region
      $region49: #{tpu_custom_call.1} parent=5 // pred_check
        %p543 = pneg %p542
      $region50: #{tpu_custom_call.1} parent=5 // pred_check_branch
        %545 = sbr.rel (%p543) target = $region52
      $region51: #{tpu_custom_call.1} parent=5 // pred_region
        %s546 = ssub.s32 %s16, 2
        // Predicated region
        $region53: #{tpu_custom_call.1} parent=51 // pred_check
          %p547 = pneg %p113
        $region54: #{tpu_custom_call.1} parent=51 // pred_check_branch
          %549 = sbr.rel (%p547) target = $region56
        $region55: #{tpu_custom_call.1} parent=51 // pred_region
          %s550 = sand.u32 %s98, 1
          %s551 = scalar_lea.sflag [#allocation5], %s550
          %s552 = sand.u32 %s98, 1
          %s553 = smul.addr %s552, 64
          %s554 = scalar_lea.vmem [#allocation9], %s553
          %555 = dma.done %s551, 1024
        $region56: #{tpu_custom_call.1} parent=51 // pred_fallthru
          _
      $region52: #{tpu_custom_call.1} parent=5 // pred_fallthru
        _
    $region6: #{tpu_custom_call.1} parent=1 // loop_footer
      %s20 = sadd.s32 1, %s16
    $region7: #{tpu_custom_call.1} parent=1 // loop_footer_branch
      %15 = sbr.rel target = $region3
    $region8: #{tpu_custom_call.1} parent=1 // loop_exit
      _
    %556 = vsyncpa [#allocation4], 1
    %s557 = scalar_lea.sflag [#allocation4], 1
    %558 = vsyncpa %s557, 1
    %559 = vsyncpa [#allocation7], 1
    %560 = vsyncpa [#allocation5], 1
    %s561 = scalar_lea.sflag [#allocation5], 1
    %562 = vsyncpa %s561, 1

</llo_original>
